<compile_context>
chip_gen: v7x
topology: tpu7x:2x2x1
jax: 0.10.0
libtpu: 0.0.40
codegen_flags: <defaults>
</compile_context>

<pallas_src>
import functools

import jax
import jax.numpy as jnp
from jax.experimental import pallas as pl
from jax.experimental.pallas import tpu as pltpu


def _round_up(x, m):
    return ((x + m - 1) // m) * m


def _tacotron2_loss_kernel(mel_out_ref, mel_post_ref, mel_tgt_ref,
                           gate_out_ref, gate_tgt_ref, out_ref, acc_ref,
                           *, inv_n_mel, inv_n_gate, n_gate):
    p = pl.program_id(0)          # parallel row-split (maps to TCs on v7x)
    k = pl.program_id(1)          # reduction step over row tiles
    nk = pl.num_programs(1)

    @pl.when(k == 0)
    def _zero():
        acc_ref[...] = jnp.zeros_like(acc_ref)

    # ---- mel squared-error accumulation (elementwise, rides under DMA) ----
    mo = mel_out_ref[...].astype(jnp.float32)
    mp_ = mel_post_ref[...].astype(jnp.float32)
    mt = mel_tgt_ref[...].astype(jnp.float32)
    d0 = mo - mt
    d1 = mp_ - mt
    acc_ref[...] += d0 * d0 + d1 * d1

    @pl.when(k == nk - 1)
    def _finalize():
        # Single cross-lane/sublane reduce per split, only at the last step.
        mel_partial = jnp.sum(acc_ref[...]) * jnp.float32(inv_n_mel)

        # ---- gate BCE-with-logits, computed once per split finalize (tiny);
        #      only the p == 0 split contributes it to the total. ----
        x = gate_out_ref[...].astype(jnp.float32)
        t = gate_tgt_ref[...].astype(jnp.float32)
        gc = x.shape[1]
        rows = jax.lax.broadcasted_iota(jnp.int32, x.shape, 0)
        cols = jax.lax.broadcasted_iota(jnp.int32, x.shape, 1)
        valid = (rows * gc + cols) < n_gate
        # numerically stable: max(x,0) - x*t + log(1 + exp(-|x|))
        bce = jnp.maximum(x, 0.0) - x * t + jnp.log1p(jnp.exp(-jnp.abs(x)))
        bce = jnp.where(valid, bce, jnp.float32(0.0))
        gate_loss = jnp.sum(bce) * jnp.float32(inv_n_gate)
        gate_loss = jnp.where(p == 0, gate_loss, jnp.float32(0.0))

        # Broadcast the per-split partial across its whole (8,128) output
        # block (lane-dense unmasked store); wrapper reads [0,0] of each block.
        out_ref[...] = jnp.full(out_ref.shape, mel_partial + gate_loss,
                                dtype=jnp.float32)


def tacotron2_loss(model_output, targets, *, num_parallel=2,
                   target_tile_bytes=1 << 20):
    """model_output = (mel_out, mel_out_postnet, gate_out, _),
       targets      = (mel_target, gate_target)."""
    mel_out, mel_out_postnet, gate_out, _ = model_output
    mel_target, gate_target = targets

    B, M, T = mel_out.shape
    R = B * M
    n_mel = R * T

    # ---- mel glue: (B, M, T) -> (R, T), zero-pad rows so the grid tiles exactly.
    mel_out_2d = mel_out.reshape(R, T)
    mel_post_2d = mel_out_postnet.reshape(R, T)
    mel_tgt_2d = mel_target.reshape(R, T)

    mel_itembytes = jnp.dtype(mel_out.dtype).itemsize
    P = max(1, int(num_parallel))

    # ~target_tile_bytes per input tile (native dtype), rows multiple of 8,
    # never larger than the per-split work.
    tile_rows = max(8, min(512, target_tile_bytes // max(1, T * mel_itembytes)))
    tile_rows = max(8, (tile_rows // 8) * 8)
    rows_per_split = -(-R // P)
    tile_rows = min(tile_rows, _round_up(rows_per_split, 8))
    K = -(-R // (P * tile_rows))          # reduction steps per split
    R_pad = P * K * tile_rows

    def pad_rows(x2d):
        if R_pad == R:
            return x2d
        return jnp.pad(x2d, ((0, R_pad - R), (0, 0)))

    mel_out_2d = pad_rows(mel_out_2d)
    mel_post_2d = pad_rows(mel_post_2d)
    mel_tgt_2d = pad_rows(mel_tgt_2d)

    # ---- gate glue: flatten, pad, reshape to (8, Gc) for full vreg use.
    gate_x_flat = gate_out.reshape(-1)
    gate_t_flat = gate_target.reshape(-1)
    n_gate = gate_x_flat.shape[0]
    gc = _round_up(-(-n_gate // 8), 128)
    gpad = 8 * gc - n_gate
    gate_x = jnp.pad(gate_x_flat, (0, gpad)).reshape(8, gc)
    gate_t = jnp.pad(gate_t_flat, (0, gpad)).reshape(8, gc)

    kernel = functools.partial(
        _tacotron2_loss_kernel,
        inv_n_mel=1.0 / float(n_mel),
        inv_n_gate=1.0 / float(n_gate),
        n_gate=n_gate,
    )

    mel_spec = pl.BlockSpec((tile_rows, T), lambda p, k, nk=K: (p * nk + k, 0))
    gate_spec = pl.BlockSpec((8, gc), lambda p, k: (0, 0))
    out_spec = pl.BlockSpec((8, 128), lambda p, k: (p, 0))

    gate_itembytes = jnp.dtype(gate_out.dtype).itemsize
    cost = pl.CostEstimate(
        flops=6 * n_mel + 6 * n_gate,
        transcendentals=2 * n_gate,
        bytes_accessed=(3 * n_mel * mel_itembytes
                        + 2 * n_gate * gate_itembytes
                        + P * 8 * 128 * 4),
    )

    out = pl.pallas_call(
        kernel,
        out_shape=jax.ShapeDtypeStruct((P * 8, 128), jnp.float32),
        grid_spec=pltpu.PrefetchScalarGridSpec(
            num_scalar_prefetch=0,
            grid=(P, K),
            in_specs=[mel_spec, mel_spec, mel_spec, gate_spec, gate_spec],
            out_specs=out_spec,
            scratch_shapes=[pltpu.VMEM((tile_rows, T), jnp.float32)],
        ),
        compiler_params=pltpu.CompilerParams(
            dimension_semantics=("parallel", "arbitrary")),
        cost_estimate=cost,
    )(mel_out_2d, mel_post_2d, mel_tgt_2d, gate_x, gate_t)

    # One scalar per parallel split lives at [0,0] of each (8,128) block.
    partials = out.reshape(P, 8, 128)[:, 0, 0]
    return jnp.sum(partials)


def _reference_loss(model_output, targets):
    mel_out, mel_out_postnet, gate_out, _ = model_output
    mel_target, gate_target = targets
    x = gate_out.reshape(-1, 1).astype(jnp.float32)
    t = gate_target.reshape(-1, 1).astype(jnp.float32)
    mse1 = jnp.mean((mel_out.astype(jnp.float32) - mel_target.astype(jnp.float32)) ** 2)
    mse2 = jnp.mean((mel_out_postnet.astype(jnp.float32) - mel_target.astype(jnp.float32)) ** 2)
    bce = jnp.mean(jnp.maximum(x, 0.0) - x * t + jnp.log1p(jnp.exp(-jnp.abs(x))))
    return mse1 + mse2 + bce


if __name__ == "__main__":
    key = jax.random.PRNGKey(0)
    k1, k2, k3, k4, k5 = jax.random.split(key, 5)

    B, M, T = 2, 8, 16  # batch, n_mels, frames (small test shapes)

    mel_out = jax.random.normal(k1, (B, M, T), dtype=jnp.float32)
    mel_out_postnet = jax.random.normal(k2, (B, M, T), dtype=jnp.float32)
    mel_target = jax.random.normal(k3, (B, M, T), dtype=jnp.float32)
    gate_out = jax.random.normal(k4, (B, T), dtype=jnp.float32)
    gate_target = (jax.random.uniform(k5, (B, T)) > 0.5).astype(jnp.float32)

    model_output = (mel_out, mel_out_postnet, gate_out, None)
    targets = (mel_target, gate_target)

    loss = tacotron2_loss(model_output, targets)
    loss = jax.block_until_ready(loss)

    ref = _reference_loss(model_output, targets)
    assert jnp.allclose(loss, ref, atol=1e-5, rtol=1e-5), (loss, ref)

    print("KERNEL_OK")
</pallas_src>

<mosaic_0001>
module attributes {stable_mosaic.version = 11 : i64} {
  func.func @_tacotron2_loss_kernel(%arg0: i32, %arg1: i32, %arg2: memref<8x16xf32, #tpu.memory_space<vmem>>, %arg3: memref<8x16xf32, #tpu.memory_space<vmem>>, %arg4: memref<8x16xf32, #tpu.memory_space<vmem>>, %arg5: memref<8x128xf32, #tpu.memory_space<vmem>>, %arg6: memref<8x128xf32, #tpu.memory_space<vmem>>, %arg7: memref<8x128xf32, #tpu.memory_space<vmem>>, %arg8: memref<8x16xf32, #tpu.memory_space<vmem>>) attributes {dimension_semantics = [#tpu.dimension_semantics<parallel>, #tpu.dimension_semantics<arbitrary>], iteration_bounds = array<i64: 2, 1>, scalar_prefetch = 0 : i64, scratch_operands = 1 : i64, tpu.core_type = #tpu.core_type<tc>, window_params = [{transform_indices = @transform_0, window_bounds = array<i64: 8, 16>}, {transform_indices = @transform_1, window_bounds = array<i64: 8, 16>}, {transform_indices = @transform_2, window_bounds = array<i64: 8, 16>}, {pipeline_mode = #tpu.pipeline_mode<synchronous>, transform_indices = @transform_3, window_bounds = array<i64: 8, 128>}, {pipeline_mode = #tpu.pipeline_mode<synchronous>, transform_indices = @transform_4, window_bounds = array<i64: 8, 128>}, {transform_indices = @transform_5, window_bounds = array<i64: 8, 128>}]} {
    %c0_i32 = arith.constant 0 : i32
    %0 = arith.cmpi eq, %arg1, %c0_i32 : i32
    %1 = arith.extui %0 : i1 to i32
    %c0_i32_0 = arith.constant 0 : i32
    %2 = arith.cmpi ne, %1, %c0_i32_0 : i32
    scf.if %2 {
      %cst = arith.constant 0.000000e+00 : f32
      %17 = vector.broadcast %cst : f32 to vector<8x16xf32>
      %c0_12 = arith.constant 0 : index
      %c0_13 = arith.constant 0 : index
      %18 = vector.load %arg8[%c0_12, %c0_13] : memref<8x16xf32, #tpu.memory_space<vmem>>, vector<8x16xf32>
      tpu.vector_store %arg8[%c0_12, %c0_13], %17 {strides = array<i32>} : memref<8x16xf32, #tpu.memory_space<vmem>>, vector<8x16xf32>,
    } else {
    }
    %c0 = arith.constant 0 : index
    %c0_1 = arith.constant 0 : index
    %3 = vector.load %arg2[%c0, %c0_1] : memref<8x16xf32, #tpu.memory_space<vmem>>, vector<8x16xf32>
    %c0_2 = arith.constant 0 : index
    %c0_3 = arith.constant 0 : index
    %4 = vector.load %arg3[%c0_2, %c0_3] : memref<8x16xf32, #tpu.memory_space<vmem>>, vector<8x16xf32>
    %c0_4 = arith.constant 0 : index
    %c0_5 = arith.constant 0 : index
    %5 = vector.load %arg4[%c0_4, %c0_5] : memref<8x16xf32, #tpu.memory_space<vmem>>, vector<8x16xf32>
    %6 = arith.subf %3, %5 : vector<8x16xf32>
    %7 = arith.subf %4, %5 : vector<8x16xf32>
    %c0_6 = arith.constant 0 : index
    %c0_7 = arith.constant 0 : index
    %8 = vector.load %arg8[%c0_6, %c0_7] : memref<8x16xf32, #tpu.memory_space<vmem>>, vector<8x16xf32>
    %9 = arith.mulf %6, %6 : vector<8x16xf32>
    %10 = arith.mulf %7, %7 : vector<8x16xf32>
    %11 = arith.addf %9, %10 : vector<8x16xf32>
    %12 = arith.addf %8, %11 : vector<8x16xf32>
    %c0_8 = arith.constant 0 : index
    %c0_9 = arith.constant 0 : index
    %13 = vector.load %arg8[%c0_8, %c0_9] : memref<8x16xf32, #tpu.memory_space<vmem>>, vector<8x16xf32>
    tpu.vector_store %arg8[%c0_8, %c0_9], %12 {strides = array<i32>} : memref<8x16xf32, #tpu.memory_space<vmem>>, vector<8x16xf32>,
    %c0_i32_10 = arith.constant 0 : i32
    %14 = arith.cmpi eq, %arg1, %c0_i32_10 : i32
    %15 = arith.extui %14 : i1 to i32
    %c0_i32_11 = arith.constant 0 : i32
    %16 = arith.cmpi ne, %15, %c0_i32_11 : i32
    scf.if %16 {
      %c0_12 = arith.constant 0 : index
      %c0_13 = arith.constant 0 : index
      %17 = vector.load %arg8[%c0_12, %c0_13] : memref<8x16xf32, #tpu.memory_space<vmem>>, vector<8x16xf32>
      %18 = vector.shape_cast %17 : vector<8x16xf32> to vector<1x8x16xf32>
      %cst = arith.constant dense<0.000000e+00> : vector<1xf32>
      %19 = vector.multi_reduction <add>, %18, %cst [1, 2] : vector<1x8x16xf32> to vector<1xf32>
      %20 = vector.shape_cast %19 : vector<1xf32> to vector<1x1x1xf32>
      %21 = vector.extract %20[0, 0, 0] : f32 from vector<1x1x1xf32>
      %cst_14 = arith.constant 3.906250e-03 : f32
      %22 = arith.mulf %21, %cst_14 : f32
      %c0_15 = arith.constant 0 : index
      %c0_16 = arith.constant 0 : index
      %23 = vector.load %arg5[%c0_15, %c0_16] : memref<8x128xf32, #tpu.memory_space<vmem>>, vector<8x128xf32>
      %c0_17 = arith.constant 0 : index
      %c0_18 = arith.constant 0 : index
      %24 = vector.load %arg6[%c0_17, %c0_18] : memref<8x128xf32, #tpu.memory_space<vmem>>, vector<8x128xf32>
      %25 = tpu.iota {dimensions = array<i32: 0>} : vector<8x128xi32>
      %26 = tpu.iota {dimensions = array<i32: 1>} : vector<8x128xi32>
      %c128_i32 = arith.constant 128 : i32
      %27 = vector.broadcast %c128_i32 : i32 to vector<8x128xi32>
      %28 = arith.muli %25, %27 : vector<8x128xi32>
      %29 = arith.addi %28, %26 : vector<8x128xi32>
      %c32_i32 = arith.constant 32 : i32
      %30 = vector.broadcast %c32_i32 : i32 to vector<8x128xi32>
      %31 = arith.cmpi slt, %29, %30 : vector<8x128xi32>
      %cst_19 = arith.constant 0.000000e+00 : f32
      %32 = vector.broadcast %cst_19 : f32 to vector<8x128xf32>
      %33 = arith.maximumf %23, %32 : vector<8x128xf32>
      %34 = arith.mulf %23, %24 : vector<8x128xf32>
      %35 = arith.subf %33, %34 : vector<8x128xf32>
      %36 = math.absf %23 : vector<8x128xf32>
      %cst_20 = arith.constant 0.000000e+00 : f32
      %37 = vector.broadcast %cst_20 : f32 to vector<8x128xf32>
      %38 = arith.subf %37, %36 : vector<8x128xf32>
      %39 = math.exp %38 : vector<8x128xf32>
      %40 = math.log1p %39 : vector<8x128xf32>
      %41 = arith.addf %35, %40 : vector<8x128xf32>
      %cst_21 = arith.constant 0.000000e+00 : f32
      %42 = vector.broadcast %cst_21 : f32 to vector<8x128xf32>
      %43 = arith.select %31, %41, %42 : vector<8x128xi1>, vector<8x128xf32>
      %44 = vector.shape_cast %43 : vector<8x128xf32> to vector<1x8x128xf32>
      %cst_22 = arith.constant dense<0.000000e+00> : vector<1xf32>
      %45 = vector.multi_reduction <add>, %44, %cst_22 [1, 2] : vector<1x8x128xf32> to vector<1xf32>
      %46 = vector.shape_cast %45 : vector<1xf32> to vector<1x1x1xf32>
      %47 = vector.extract %46[0, 0, 0] : f32 from vector<1x1x1xf32>
      %cst_23 = arith.constant 3.125000e-02 : f32
      %48 = arith.mulf %47, %cst_23 : f32
      %c0_i32_24 = arith.constant 0 : i32
      %49 = arith.cmpi eq, %arg0, %c0_i32_24 : i32
      %cst_25 = arith.constant 0.000000e+00 : f32
      %50 = arith.select %49, %48, %cst_25 : f32
      %51 = arith.addf %22, %50 : f32
      %52 = vector.broadcast %51 : f32 to vector<8x128xf32>
      %c0_26 = arith.constant 0 : index
      %c0_27 = arith.constant 0 : index
      %53 = vector.load %arg7[%c0_26, %c0_27] : memref<8x128xf32, #tpu.memory_space<vmem>>, vector<8x128xf32>
      tpu.vector_store %arg7[%c0_26, %c0_27], %52 {strides = array<i32>} : memref<8x128xf32, #tpu.memory_space<vmem>>, vector<8x128xf32>,
    } else {
    }
    return
  }
  func.func @transform_0(%arg0: i32, %arg1: i32) -> (i32, i32) {
    %c1_i32 = arith.constant 1 : i32
    %0 = arith.muli %arg0, %c1_i32 : i32
    %1 = arith.addi %0, %arg1 : i32
    %c0_i32 = arith.constant 0 : i32
    %c0_i32_0 = arith.constant 0 : i32
    return %1, %c0_i32 : i32, i32
  }
  func.func @transform_1(%arg0: i32, %arg1: i32) -> (i32, i32) {
    %c1_i32 = arith.constant 1 : i32
    %0 = arith.muli %arg0, %c1_i32 : i32
    %1 = arith.addi %0, %arg1 : i32
    %c0_i32 = arith.constant 0 : i32
    %c0_i32_0 = arith.constant 0 : i32
    return %1, %c0_i32 : i32, i32
  }
  func.func @transform_2(%arg0: i32, %arg1: i32) -> (i32, i32) {
    %c1_i32 = arith.constant 1 : i32
    %0 = arith.muli %arg0, %c1_i32 : i32
    %1 = arith.addi %0, %arg1 : i32
    %c0_i32 = arith.constant 0 : i32
    %c0_i32_0 = arith.constant 0 : i32
    return %1, %c0_i32 : i32, i32
  }
  func.func @transform_3(%arg0: i32, %arg1: i32) -> (i32, i32) {
    %c0_i32 = arith.constant 0 : i32
    %c0_i32_0 = arith.constant 0 : i32
    %c0_i32_1 = arith.constant 0 : i32
    return %c0_i32, %c0_i32_0 : i32, i32
  }
  func.func @transform_4(%arg0: i32, %arg1: i32) -> (i32, i32) {
    %c0_i32 = arith.constant 0 : i32
    %c0_i32_0 = arith.constant 0 : i32
    %c0_i32_1 = arith.constant 0 : i32
    return %c0_i32, %c0_i32_0 : i32, i32
  }
  func.func @transform_5(%arg0: i32, %arg1: i32) -> (i32, i32) {
    %c0_i32 = arith.constant 0 : i32
    %c0_i32_0 = arith.constant 0 : i32
    return %arg0, %c0_i32 : i32, i32
  }
}

</mosaic_0001>

<llo_original>
// kernel: tpu_custom_call.1
$region0: #{tpu_custom_call.1}
  #allocation0 [shape = 'u32[]', space=smem, size = 0x4, offset = 0x4, fixed_abs, tag = 'smem constant byte address 0x4 - core index']
  #allocation1 [shape = 'u32[144,128]{1,0:T(1,128)}', space=vmem, size = 0x12000, scoped, tag = 'internal scratch']
  #allocation2 [shape = 'f32[8,16]{1,0:T(8,128)}', space=vmem, size = 0x1000, scoped, tag = 'scratch operand']
  %s0 = inlined_call_operand.hbm [shape: f32[16,16], index: 0, kind: input, shape index: {}]
  %s1 = inlined_call_operand.hbm [shape: f32[16,16], index: 1, kind: input, shape index: {}]
  %s2 = inlined_call_operand.hbm [shape: f32[16,16], index: 2, kind: input, shape index: {}]
  %s3 = inlined_call_operand.vmem [shape: f32[8,128], index: 3, kind: input, shape index: {}]
  %s4 = inlined_call_operand.hbm [shape: f32[8,128], index: 4, kind: input, shape index: {}]
  %s5 = inlined_call_operand.hbm [shape: f32[16,128], index: 5, kind: output, shape index: {}]
  %s6 = sld [smem:[#allocation0]]
  $region77: #{tpu_custom_call.1} parent=0
    _
  %s8 = ssub.s32 1, %s6
  %s9 = scalar_select 0, %s8, %s6
  $region1: #{tpu_custom_call.1} parent=0
    #allocation3 [shape = 'u8[8192]{0}', space=vmem, size = 0x2000, scoped, tag = 'input window, operand 0']
    #allocation4 [shape = 's32[2]{0}', space=sflag, size = 0x8, scoped, tag = 'scoped memory for tpu_custom_call.1']
    #allocation5 [shape = 's32[2]{0}', space=sflag, size = 0x8, scoped, tag = 'scoped memory for tpu_custom_call.1']
    #allocation6 [shape = 'u8[8192]{0}', space=vmem, size = 0x2000, scoped, tag = 'input window, operand 1']
    #allocation7 [shape = 's32[2]{0}', space=sflag, size = 0x8, scoped, tag = 'scoped memory for tpu_custom_call.1']
    #allocation8 [shape = 'u8[8192]{0}', space=vmem, size = 0x2000, scoped, tag = 'input window, operand 2']
    #allocation9 [shape = 'u8[4096]{0}', space=vmem, size = 0x1000, scoped, tag = 'input window, operand 4, single buffered']
    #allocation10 [shape = 's32[1]{0}', space=sflag, size = 0x4, scoped, tag = 'scoped memory for tpu_custom_call.1']
    #allocation11 [shape = 'u8[8192]{0}', space=vmem, size = 0x2000, scoped, tag = 'output window, operand 0']
    %10 = vsyncpa [#allocation4], 0
    %s11 = scalar_lea.sflag [#allocation4], 1
    %12 = vsyncpa %s11, 0
    %13 = vsyncpa [#allocation7], 0
    %s14 = scalar_lea.sflag [#allocation7], 1
    %15 = vsyncpa %s14, 0
    %16 = vsyncpa [#allocation10], 0
    %17 = vsyncpa [#allocation5], 0
    %s18 = scalar_lea.sflag [#allocation5], 1
    %19 = vsyncpa %s18, 0
    loop: start=0, step=1, limit=4
    $region2: #{tpu_custom_call.1} parent=1 // loop_pre_header
      _
    $region3: #{tpu_custom_call.1} parent=1 // loop_header
      %s21 = sphi 0, %s25
      %p22 = scmp.ge.s32.totalorder %s21, 4
      %s28 = sphi 0, %s40
      %s29 = sphi 0, %s36
      %s30 = sphi 0, %s28
      %s31 = sphi 0, %s29
      %s32 = sphi 0, %s30
      %s33 = sphi 0, %s31
      %s45 = sphi 0, %s47
      %s48 = sphi 0, %s45
      %s49 = sphi 0, %s48
      %s65 = sphi 0, %s49
      %s73 = sphi 0, %s75
      %s76 = sphi 0, %s73
      %s77 = sphi 0, %s76
      %s93 = sphi 0, %s77
      %s101 = sphi 0, %s103
      %s104 = sphi 0, %s101
      %s105 = sphi 0, %s104
      %s121 = sphi 0, %s105
      %s125 = sphi 0, %s125
      %s127 = sphi 0, %s125
      %s128 = sphi 0, %s127
      %s142 = sphi 0, %s128
      %s146 = sphi 0, %s146
      %s148 = sphi 0, %s146
      %s149 = sphi 0, %s148
      %s163 = sphi 0, %s149
      %s169 = sphi 0, %s171
      %s172 = sphi 0, %s169
      %s173 = sphi 0, %s172
      %s189 = sphi 0, %s173
    $region4: #{tpu_custom_call.1} parent=1 // loop_header_branch
      %24 = sbr.rel (%p22) target = $region8
    $region5: #{tpu_custom_call.1} parent=1 // loop_body
      %s26 = ssub.s32 %s21, 1
      %s27 = ssub.s32 %s21, 2
      %s34 = sadd.s32 1, %s29
      %p35 = scmp.ge.s32.totalorder %s34, 1
      %s36 = scalar_select %p35, 0, %s34
      %s37 = sadd.s32 1, %s28
      %s38 = scalar_select %p35, %s37, %s28
      %p39 = scmp.ge.s32.totalorder %s38, 2
      %s40 = scalar_select %p39, 0, %s38
      %s41 = sadd.s32 %s28, %s29
      %s42 = sadd.s32 %s40, %s36
      %s43 = ssub.s32 %s41, %s42
      %p44 = scmp.eq.s32.totalorder %s43, 0
      %s46 = sadd.s32 %s45, 1
      %s47 = scalar_select %p44, %s45, %s46
      %p50 = pneg %p44
      %p51 = scmp.eq.s32.totalorder %s21, 1
      %p52 = por %p50, %p51
      %p53 = scmp.ne.s32.totalorder %s45, %s48
      %p54 = scmp.eq.s32.totalorder %s21, 0
      %p55 = por %p53, %p54
      %p56 = scmp.ne.s32.totalorder %s45, %s48
      %p57 = scmp.eq.s32.totalorder %s26, 1
      %p58 = por %p56, %p57
      %p59 = scmp.ne.s32.totalorder %s48, %s49
      %p60 = scmp.eq.s32.totalorder %s26, 0
      %p61 = por %p59, %p60
      %p62 = scmp.ne.s32.totalorder %s48, %s49
      %p63 = scmp.eq.s32.totalorder %s27, 1
      %p64 = por %p62, %p63
      %p66 = scmp.ne.s32.totalorder %s49, %s65
      %p67 = scmp.eq.s32.totalorder %s27, 0
      %p68 = por %p66, %p67
      %s69 = sadd.s32 %s28, %s29
      %s70 = sadd.s32 %s40, %s36
      %s71 = ssub.s32 %s69, %s70
      %p72 = scmp.eq.s32.totalorder %s71, 0
      %s74 = sadd.s32 %s73, 1
      %s75 = scalar_select %p72, %s73, %s74
      %p78 = pneg %p72
      %p79 = scmp.eq.s32.totalorder %s21, 1
      %p80 = por %p78, %p79
      %p81 = scmp.ne.s32.totalorder %s73, %s76
      %p82 = scmp.eq.s32.totalorder %s21, 0
      %p83 = por %p81, %p82
      %p84 = scmp.ne.s32.totalorder %s73, %s76
      %p85 = scmp.eq.s32.totalorder %s26, 1
      %p86 = por %p84, %p85
      %p87 = scmp.ne.s32.totalorder %s76, %s77
      %p88 = scmp.eq.s32.totalorder %s26, 0
      %p89 = por %p87, %p88
      %p90 = scmp.ne.s32.totalorder %s76, %s77
      %p91 = scmp.eq.s32.totalorder %s27, 1
      %p92 = por %p90, %p91
      %p94 = scmp.ne.s32.totalorder %s77, %s93
      %p95 = scmp.eq.s32.totalorder %s27, 0
      %p96 = por %p94, %p95
      %s97 = sadd.s32 %s28, %s29
      %s98 = sadd.s32 %s40, %s36
      %s99 = ssub.s32 %s97, %s98
      %p100 = scmp.eq.s32.totalorder %s99, 0
      %s102 = sadd.s32 %s101, 1
      %s103 = scalar_select %p100, %s101, %s102
      %p106 = pneg %p100
      %p107 = scmp.eq.s32.totalorder %s21, 1
      %p108 = por %p106, %p107
      %p109 = scmp.ne.s32.totalorder %s101, %s104
      %p110 = scmp.eq.s32.totalorder %s21, 0
      %p111 = por %p109, %p110
      %p112 = scmp.ne.s32.totalorder %s101, %s104
      %p113 = scmp.eq.s32.totalorder %s26, 1
      %p114 = por %p112, %p113
      %p115 = scmp.ne.s32.totalorder %s104, %s105
      %p116 = scmp.eq.s32.totalorder %s26, 0
      %p117 = por %p115, %p116
      %p118 = scmp.ne.s32.totalorder %s104, %s105
      %p119 = scmp.eq.s32.totalorder %s27, 1
      %p120 = por %p118, %p119
      %p122 = scmp.ne.s32.totalorder %s105, %s121
      %p123 = scmp.eq.s32.totalorder %s27, 0
      %p124 = por %p122, %p123
      %s126 = sadd.s32 %s125, 1
      %p129 = scmp.eq.s32.totalorder %s21, 1
      %p130 = scmp.ne.s32.totalorder %s125, %s127
      %p131 = scmp.eq.s32.totalorder %s21, 0
      %p132 = por %p130, %p131
      %p133 = scmp.ne.s32.totalorder %s125, %s127
      %p134 = scmp.eq.s32.totalorder %s26, 1
      %p135 = por %p133, %p134
      %p136 = scmp.ne.s32.totalorder %s127, %s128
      %p137 = scmp.eq.s32.totalorder %s26, 0
      %p138 = por %p136, %p137
      %p139 = scmp.ne.s32.totalorder %s127, %s128
      %p140 = scmp.eq.s32.totalorder %s27, 1
      %p141 = por %p139, %p140
      %p143 = scmp.ne.s32.totalorder %s128, %s142
      %p144 = scmp.eq.s32.totalorder %s27, 0
      %p145 = por %p143, %p144
      %s147 = sadd.s32 %s146, 1
      %p150 = scmp.eq.s32.totalorder %s21, 1
      %p151 = scmp.ne.s32.totalorder %s146, %s148
      %p152 = scmp.eq.s32.totalorder %s21, 0
      %p153 = por %p151, %p152
      %p154 = scmp.ne.s32.totalorder %s146, %s148
      %p155 = scmp.eq.s32.totalorder %s26, 1
      %p156 = por %p154, %p155
      %p157 = scmp.ne.s32.totalorder %s148, %s149
      %p158 = scmp.eq.s32.totalorder %s26, 0
      %p159 = por %p157, %p158
      %p160 = scmp.ne.s32.totalorder %s148, %s149
      %p161 = scmp.eq.s32.totalorder %s27, 1
      %p162 = por %p160, %p161
      %p164 = scmp.ne.s32.totalorder %s149, %s163
      %p165 = scmp.eq.s32.totalorder %s27, 0
      %p166 = por %p164, %p165
      %s167 = ssub.s32 %s28, %s40
      %p168 = scmp.eq.s32.totalorder %s167, 0
      %s170 = sadd.s32 %s169, 1
      %s171 = scalar_select %p168, %s169, %s170
      %p174 = pneg %p168
      %p175 = scmp.eq.s32.totalorder %s21, 1
      %p176 = por %p174, %p175
      %p177 = scmp.ne.s32.totalorder %s169, %s172
      %p178 = scmp.eq.s32.totalorder %s21, 0
      %p179 = por %p177, %p178
      %p180 = scmp.ne.s32.totalorder %s169, %s172
      %p181 = scmp.eq.s32.totalorder %s26, 1
      %p182 = por %p180, %p181
      %p183 = scmp.ne.s32.totalorder %s172, %s173
      %p184 = scmp.eq.s32.totalorder %s26, 0
      %p185 = por %p183, %p184
      %p186 = scmp.ne.s32.totalorder %s172, %s173
      %p187 = scmp.eq.s32.totalorder %s27, 1
      %p188 = por %p186, %p187
      %p190 = scmp.ne.s32.totalorder %s173, %s189
      %p191 = scmp.eq.s32.totalorder %s27, 0
      %p192 = por %p190, %p191
      %p193 = scmp.le.s32.totalorder 1, %s21
      %p194 = scmp.lt.s32.totalorder %s21, 3
      %p195 = pnand %p193, %p194
      %p196 = pneg %p195
      // Predicated region
      $region9: #{tpu_custom_call.1} parent=5 // pred_check
        _
      $region10: #{tpu_custom_call.1} parent=5 // pred_check_branch
        %198 = sbr.rel (%p195) target = $region12
      $region11: #{tpu_custom_call.1} parent=5 // pred_region
        %s199 = ssub.s32 %s21, 1
        // Predicated region
        $region13: #{tpu_custom_call.1} parent=11 // pred_check
          %p200 = pneg %p138
        $region14: #{tpu_custom_call.1} parent=11 // pred_check_branch
          %202 = sbr.rel (%p200) target = $region16
        $region15: #{tpu_custom_call.1} parent=11 // pred_region
          _
        $region16: #{tpu_custom_call.1} parent=11 // pred_fallthru
          _
        // Predicated region
        $region17: #{tpu_custom_call.1} parent=11 // pred_check
          %p203 = pneg %p159
        $region18: #{tpu_custom_call.1} parent=11 // pred_check_branch
          %205 = sbr.rel (%p203) target = $region20
        $region19: #{tpu_custom_call.1} parent=11 // pred_region
          %s207 = ssub.s32 128, 128
          %208 = vsyncadd [#allocation10], %s207
          %s210 = sshll.u32 [#allocation9], 4
          %s211 = int_to_ptr.vmem [resolvable:$true] %s210
          %213 = dma.hbm_to_vmem [thread:$0]  %s4, 128, %s211, [#allocation10]
        $region20: #{tpu_custom_call.1} parent=11 // pred_fallthru
          _
      $region12: #{tpu_custom_call.1} parent=5 // pred_fallthru
        _
      %p214 = scmp.lt.s32.totalorder %s21, 2
      // Predicated region
      $region21: #{tpu_custom_call.1} parent=5 // pred_check
        %p215 = pneg %p214
      $region22: #{tpu_custom_call.1} parent=5 // pred_check_branch
        %217 = sbr.rel (%p215) target = $region24
      $region23: #{tpu_custom_call.1} parent=5 // pred_region
        // Predicated region
        $region25: #{tpu_custom_call.1} parent=23 // pred_check
          %p218 = pneg %p55
        $region26: #{tpu_custom_call.1} parent=23 // pred_check_branch
          %220 = sbr.rel (%p218) target = $region28
        $region27: #{tpu_custom_call.1} parent=23 // pred_region
          %s221 = sand.u32 %s45, 1
          %s222 = scalar_lea.sflag [#allocation4], %s221
          %s223 = sand.u32 %s45, 1
          %s224 = smul.addr %s223, 8
          %s225 = scalar_lea.vmem [#allocation3], %s224
          %s226 = sadd.s32 %s28, %s29
          %s228 = ssub.s32 128, 128
          %229 = vsyncadd %s222, %s228
          %s230 = smul.addr %s226, 128
          %s231 = scalar_lea.hbm %s0, %s230
          %s233 = sshll.u32 %s225, 4
          %s234 = int_to_ptr.vmem [resolvable:$true] %s233
          %236 = dma.hbm_to_vmem [thread:$0]  %s231, 128, %s234, %s222
        $region28: #{tpu_custom_call.1} parent=23 // pred_fallthru
          _
        // Predicated region
        $region29: #{tpu_custom_call.1} parent=23 // pred_check
          %p237 = pneg %p83
        $region30: #{tpu_custom_call.1} parent=23 // pred_check_branch
          %239 = sbr.rel (%p237) target = $region32
        $region31: #{tpu_custom_call.1} parent=23 // pred_region
          %s240 = sand.u32 %s21, 1
          %s241 = scalar_lea.sflag [#allocation7], %s240
          %s242 = sand.u32 %s73, 1
          %s243 = smul.addr %s242, 8
          %s244 = scalar_lea.vmem [#allocation6], %s243
          %s245 = sadd.s32 %s28, %s29
          %s247 = ssub.s32 128, 128
          %248 = vsyncadd %s241, %s247
          %s249 = smul.addr %s245, 128
          %s250 = scalar_lea.hbm %s1, %s249
          %s252 = sshll.u32 %s244, 4
          %s253 = int_to_ptr.vmem [resolvable:$true] %s252
          %255 = dma.hbm_to_vmem [thread:$0]  %s250, 128, %s253, %s241
        $region32: #{tpu_custom_call.1} parent=23 // pred_fallthru
          _
        // Predicated region
        $region33: #{tpu_custom_call.1} parent=23 // pred_check
          %p256 = pneg %p111
        $region34: #{tpu_custom_call.1} parent=23 // pred_check_branch
          %258 = sbr.rel (%p256) target = $region36
        $region35: #{tpu_custom_call.1} parent=23 // pred_region
          %s259 = sand.u32 %s21, 1
          %s260 = scalar_lea.sflag [#allocation7], %s259
          %s261 = sand.u32 %s101, 1
          %s262 = smul.addr %s261, 8
          %s263 = scalar_lea.vmem [#allocation8], %s262
          %s264 = sadd.s32 %s28, %s29
          %s266 = ssub.s32 128, 128
          %267 = vsyncadd %s260, %s266
          %s268 = smul.addr %s264, 128
          %s269 = scalar_lea.hbm %s2, %s268
          %s271 = sshll.u32 %s263, 4
          %s272 = int_to_ptr.vmem [resolvable:$true] %s271
          %274 = dma.hbm_to_vmem [thread:$0]  %s269, 128, %s272, %s260
        $region36: #{tpu_custom_call.1} parent=23 // pred_fallthru
          _
      $region24: #{tpu_custom_call.1} parent=5 // pred_fallthru
        _
      %p275 = scmp.le.s32.totalorder 1, %s21
      %p276 = scmp.lt.s32.totalorder %s21, 3
      %p277 = pnand %p275, %p276
      %p278 = pneg %p277
      // Predicated region
      $region37: #{tpu_custom_call.1} parent=5 // pred_check
        _
      $region38: #{tpu_custom_call.1} parent=5 // pred_check_branch
        %280 = sbr.rel (%p277) target = $region40
      $region39: #{tpu_custom_call.1} parent=5 // pred_region
        %s281 = ssub.s32 %s21, 1
        %s282 = sand.u32 %s48, 1
        %s283 = scalar_lea.sflag [#allocation4], %s282
        %s284 = sand.u32 %s48, 1
        %s285 = smul.addr %s284, 8
        %s286 = scalar_lea.vmem [#allocation3], %s285
        // Predicated region
        $region41: #{tpu_custom_call.1} parent=39 // pred_check
          %p287 = pneg %p61
        $region42: #{tpu_custom_call.1} parent=39 // pred_check_branch
          %289 = sbr.rel (%p287) target = $region44
        $region43: #{tpu_custom_call.1} parent=39 // pred_region
          %290 = dma.done %s283, 128
        $region44: #{tpu_custom_call.1} parent=39 // pred_fallthru
          _
        %s291 = sand.u32 %s26, 1
        %s292 = scalar_lea.sflag [#allocation7], %s291
        %s293 = sand.u32 %s76, 1
        %s294 = smul.addr %s293, 8
        %s295 = scalar_lea.vmem [#allocation6], %s294
        // Predicated region
        $region45: #{tpu_custom_call.1} parent=39 // pred_check
          %p296 = pneg %p89
        $region46: #{tpu_custom_call.1} parent=39 // pred_check_branch
          %298 = sbr.rel (%p296) target = $region48
        $region47: #{tpu_custom_call.1} parent=39 // pred_region
          %299 = dma.done %s292, 128
        $region48: #{tpu_custom_call.1} parent=39 // pred_fallthru
          _
        %s300 = sand.u32 %s26, 1
        %s301 = scalar_lea.sflag [#allocation7], %s300
        %s302 = sand.u32 %s104, 1
        %s303 = smul.addr %s302, 8
        %s304 = scalar_lea.vmem [#allocation8], %s303
        // Predicated region
        $region49: #{tpu_custom_call.1} parent=39 // pred_check
          %p305 = pneg %p117
        $region50: #{tpu_custom_call.1} parent=39 // pred_check_branch
          %307 = sbr.rel (%p305) target = $region52
        $region51: #{tpu_custom_call.1} parent=39 // pred_region
          %308 = dma.done %s301, 128
        $region52: #{tpu_custom_call.1} parent=39 // pred_fallthru
          _
        // Predicated region
        $region53: #{tpu_custom_call.1} parent=39 // pred_check
          %p309 = pneg %p159
        $region54: #{tpu_custom_call.1} parent=39 // pred_check_branch
          %311 = sbr.rel (%p309) target = $region56
        $region55: #{tpu_custom_call.1} parent=39 // pred_region
          %312 = dma.done [#allocation10], 128
        $region56: #{tpu_custom_call.1} parent=39 // pred_fallthru
          _
        %s313 = sand.u32 %s48, 1
        %s314 = scalar_lea.sflag [#allocation4], %s313
        %s315 = sand.u32 %s48, 1
        %s316 = smul.addr %s315, 8
        %s317 = scalar_lea.vmem [#allocation3], %s316
        %p318 = pneg %p61
        %p319 = pneg %p58
        %s320 = sand.u32 %s26, 1
        %s321 = scalar_lea.sflag [#allocation7], %s320
        %s322 = sand.u32 %s76, 1
        %s323 = smul.addr %s322, 8
        %s324 = scalar_lea.vmem [#allocation6], %s323
        %p325 = pneg %p89
        %p326 = pneg %p86
        %s327 = sand.u32 %s26, 1
        %s328 = scalar_lea.sflag [#allocation7], %s327
        %s329 = sand.u32 %s104, 1
        %s330 = smul.addr %s329, 8
        %s331 = scalar_lea.vmem [#allocation8], %s330
        %p332 = pneg %p117
        %p333 = pneg %p114
        %p334 = pneg %p138
        %p335 = pneg %p135
        %p336 = pneg %p159
        %p337 = pneg %p156
        %p338 = pneg %p185
        %p339 = pneg %p182
        %s340 = sand.u32 %s172, 1
        %s341 = scalar_lea.sflag [#allocation5], %s340
        %s342 = sand.u32 %s172, 1
        %s343 = smul.addr %s342, 8
        %s344 = scalar_lea.vmem [#allocation11], %s343
        %s345 = sadd.s32 %s30, %s31
        %s346 = sadd.s32 %s30, %s31
        %s347 = sadd.s32 %s30, %s31
        %p348 = scmp.eq.s32.totalorder %s31, 0
        // Predicated region
        $region57: #{tpu_custom_call.1} parent=39 // pred_check
          %p349 = pneg %p348
        $region58: #{tpu_custom_call.1} parent=39 // pred_check_branch
          %351 = sbr.rel (%p349) target = $region60
        $region59: #{tpu_custom_call.1} parent=39 // pred_region
          %vm352 = vcmask 130048
          %353 = vst.msk [vmem:[#allocation2] sm:$0xff] %vm352, 0.0
        $region60: #{tpu_custom_call.1} parent=39 // pred_fallthru
          _
        %v354 = vld [vmem:[%s286] sm:$0xff]
        %v355 = vld [vmem:[%s295] sm:$0xff]
        %v356 = vld [vmem:[%s304] sm:$0xff]
        %v357 = vsub.f32 %v354, %v356
        %v358 = vsub.f32 %v355, %v356
        %v359 = vld [vmem:[#allocation2] sm:$0xff]
        %v360 = vmul.f32 %v357, %v357
        %v361 = vmul.f32 %v358, %v358
        %v362 = vadd.f32 %v360, %v361
        %v363 = vadd.f32 %v359, %v362
        %vm364 = vcmask 130048
        %365 = vst.msk [vmem:[#allocation2] sm:$0xff] %vm364, %v363
        // Predicated region
        $region61: #{tpu_custom_call.1} parent=39 // pred_check
          %p366 = pneg %p348
        $region62: #{tpu_custom_call.1} parent=39 // pred_check_branch
          %368 = sbr.rel (%p366) target = $region64
        $region63: #{tpu_custom_call.1} parent=39 // pred_region
          %v369 = vld [vmem:[#allocation2] sm:$0xff]
          %v370 = vsel %vm364, %v369, 0.0
          %371 = vadd.xlane.f32.xlu0 %v370
          %v372 = vpop.xlane.xlu0 %371
          %v373 = vrot.slane %v372, 4
          %v374 = vadd.f32 %v372, %v373
          %v375 = vrot.slane %v374, 2
          %v376 = vadd.f32 %v374, %v375
          %v377 = vrot.slane %v376, 1
          %v378 = vadd.f32 %v376, %v377
          %s379 = vtos %v378
          %s380 = smul.f32 %s379, 0.00390625
          %v381 = vld [vmem:[%s3] sm:$0xff]
          %v382 = vld [vmem:[#allocation9] sm:$0xff]
          %v383 = vlaneseq
          %v384 = vshrl.u32 %v383, 7
          %v385 = vlaneseq
          %v386 = vand.u32 %v385, 127
          %v387 = vmul.u32 %v384, 128
          %v388 = vadd.s32 %v387, %v386
          %vm389 = vcmp.lt.s32.totalorder %v388, 32
          %v390 = vmax.f32 %v381, 0.0
          %v391 = vmul.f32 %v381, %v382
          %v392 = vsub.f32 %v390, %v391
          %v393 = vand.u32 2147483647, %v381
          %v394 = vsub.f32 0.0, %v393
          %v395 = vmul.f32 %v394, 1.442695
          %v396 = vpow.pop %v395
          %v397 = vadd.f32 %v396, 1.0
          %v398 = vlog2.pop %v397
          %v399 = vmul.f32 %v398, 0.6931472
          %v400 = vmul.f32 -0.5, %v396
          %v401 = vadd.f32 %v400, 1.0
          %v402 = vmul.f32 %v401, %v396
          %v403 = vand.u32 2147483647, %v396
          %vm404 = vcmp.lt.f32.partialorder %v403, 0.0004427343
          %v405 = vsel %vm404, %v402, %v399
          %v406 = vadd.f32 %v392, %v405
          %v407 = vsel %vm389, %v406, 0.0
          %408 = vadd.xlane.f32.xlu0 %v407
          %v409 = vpop.xlane.xlu0 %408
          %v410 = vrot.slane %v409, 4
          %v411 = vadd.f32 %v409, %v410
          %v412 = vrot.slane %v411, 2
          %v413 = vadd.f32 %v411, %v412
          %v414 = vrot.slane %v413, 1
          %v415 = vadd.f32 %v413, %v414
          %s416 = vtos %v415
          %s417 = smul.f32 %s416, 0.03125
          %p418 = scmp.eq.s32.totalorder %s30, 0
          %s419 = scalar_select %p418, %s417, 0.0
          %s420 = sadd.f32 %s380, %s419
          %v421 = vstv %s420
          %422 = vst [vmem:[%s344] sm:$0xff] %v421
        $region64: #{tpu_custom_call.1} parent=39 // pred_fallthru
          _
        %s423 = sand.u32 %s172, 1
        %s424 = scalar_lea.sflag [#allocation5], %s423
        %s425 = sand.u32 %s172, 1
        %s426 = smul.addr %s425, 8
        %s427 = scalar_lea.vmem [#allocation11], %s426
        // Predicated region
        $region65: #{tpu_custom_call.1} parent=39 // pred_check
          %p428 = pneg %p182
        $region66: #{tpu_custom_call.1} parent=39 // pred_check_branch
          %430 = sbr.rel (%p428) target = $region68
        $region67: #{tpu_custom_call.1} parent=39 // pred_region
          %s432 = ssub.s32 128, 128
          %433 = vsyncadd %s424, %s432
          %s434 = smul.addr %s30, 128
          %s435 = scalar_lea.hbm %s5, %s434
          %s437 = sshll.u32 %s427, 4
          %s438 = int_to_ptr.vmem [resolvable:$true] %s437
          %440 = dma.vmem_to_hbm [thread:$0]  %s438, 128, %s435, %s424
        $region68: #{tpu_custom_call.1} parent=39 // pred_fallthru
          _
      $region40: #{tpu_custom_call.1} parent=5 // pred_fallthru
        _
      %p441 = scmp.le.s32.totalorder 2, %s21
      // Predicated region
      $region69: #{tpu_custom_call.1} parent=5 // pred_check
        %p442 = pneg %p441
      $region70: #{tpu_custom_call.1} parent=5 // pred_check_branch
        %444 = sbr.rel (%p442) target = $region72
      $region71: #{tpu_custom_call.1} parent=5 // pred_region
        %s445 = ssub.s32 %s21, 2
        // Predicated region
        $region73: #{tpu_custom_call.1} parent=71 // pred_check
          %p446 = pneg %p188
        $region74: #{tpu_custom_call.1} parent=71 // pred_check_branch
          %448 = sbr.rel (%p446) target = $region76
        $region75: #{tpu_custom_call.1} parent=71 // pred_region
          %s449 = sand.u32 %s173, 1
          %s450 = scalar_lea.sflag [#allocation5], %s449
          %s451 = sand.u32 %s173, 1
          %s452 = smul.addr %s451, 8
          %s453 = scalar_lea.vmem [#allocation11], %s452
          %454 = dma.done %s450, 128
        $region76: #{tpu_custom_call.1} parent=71 // pred_fallthru
          _
      $region72: #{tpu_custom_call.1} parent=5 // pred_fallthru
        _
    $region6: #{tpu_custom_call.1} parent=1 // loop_footer
      %s25 = sadd.s32 1, %s21
    $region7: #{tpu_custom_call.1} parent=1 // loop_footer_branch
      %20 = sbr.rel target = $region3
    $region8: #{tpu_custom_call.1} parent=1 // loop_exit
      _
    %455 = vsyncpa [#allocation4], 1
    %s456 = scalar_lea.sflag [#allocation4], 1
    %457 = vsyncpa %s456, 1
    %458 = vsyncpa [#allocation7], 1
    %s459 = scalar_lea.sflag [#allocation7], 1
    %460 = vsyncpa %s459, 1
    %461 = vsyncpa [#allocation10], 1
    %462 = vsyncpa [#allocation5], 1
    %s463 = scalar_lea.sflag [#allocation5], 1
    %464 = vsyncpa %s463, 1

</llo_original>
